<compile_context>
chip_gen: v6e
topology: v6e:2x2x1
jax: 0.10.0
libtpu: 0.0.40
codegen_flags: <defaults>
</compile_context>

<pallas_src>
import functools

import jax
import jax.numpy as jnp
from jax.experimental import pallas as pl
from jax.experimental.pallas import tpu as pltpu

_BN_EPS = 1e-5
_LANE = 128


def _round_up(v, m):
    return ((v + m - 1) // m) * m


# ----------------------------------------------------------------------------
# Fused kernel: whole MLP in one invocation, activation resident in VMEM.
# ----------------------------------------------------------------------------
def _mlp_fused_kernel(num_classes, num_layers,
                      x_ref, wh_ref, bh_ref, gamma_ref, beta_ref,
                      wo_ref, bo_ref, o_ref):
    h = x_ref[...]                                              # (N, D_pad) f32

    # Hidden stack: Linear -> BN(train stats) -> ReLU.  num_layers is a small
    # static int, so a plain Python unroll is fine.
    for l in range(num_layers):
        # Linear (weights pre-transposed to (D_in, D_out) at init).
        h = jnp.dot(h, wh_ref[l], preferred_element_type=jnp.float32) + bh_ref[l]
        # BatchNorm1d training-mode forward, folded to one scale/shift per
        # feature: y = h*scale + shift.  Padded feature columns have gamma=0,
        # so they stay exactly zero through the stack.
        mean = jnp.mean(h, axis=0, keepdims=True)               # (1, D_pad)
        centered = h - mean
        var = jnp.mean(centered * centered, axis=0, keepdims=True)
        scale = gamma_ref[l] * jax.lax.rsqrt(var + _BN_EPS)
        shift = beta_ref[l] - mean * scale
        # ReLU.  Dropout(p=0) is the identity.
        h = jnp.maximum(h * scale + shift, 0.0)

    # Final Linear -> log_softmax over the (lane-padded) class axis.
    logits = jnp.dot(h, wo_ref[...], preferred_element_type=jnp.float32) + bo_ref[...]
    col = jax.lax.broadcasted_iota(jnp.int32, logits.shape, 1)
    logits = jnp.where(col < num_classes, logits, -jnp.inf)     # mask pad lanes
    m = jnp.max(logits, axis=-1, keepdims=True)
    lse = m + jnp.log(jnp.sum(jnp.exp(logits - m), axis=-1, keepdims=True))
    o_ref[...] = logits - lse


# ----------------------------------------------------------------------------
# Wrapper around pallas_call
# ----------------------------------------------------------------------------
def _vmem_spec():
    # Whole-array block resident in VMEM (everything here is tiny; the full
    # batch must stay in one block anyway so BatchNorm statistics are exact).
    return pl.BlockSpec(memory_space=pltpu.MemorySpace.VMEM)


@functools.partial(jax.jit, static_argnames=("num_classes",))
def _forward_impl(x, wh, bh, gamma, beta, wo, bo, *, num_classes):
    n = x.shape[0]
    num_layers, d_pad, _ = wh.shape
    c_pad = wo.shape[1]
    # Zero-pad the input features to the padded width (inside jit, once).
    x_pad = jnp.zeros((n, d_pad), jnp.float32).at[:, : x.shape[1]].set(x)
    kernel = functools.partial(_mlp_fused_kernel, num_classes, num_layers)
    out_pad = pl.pallas_call(
        kernel,
        out_shape=jax.ShapeDtypeStruct((n, c_pad), jnp.float32),
        in_specs=[_vmem_spec()] * 7,
        out_specs=_vmem_spec(),
    )(x_pad, wh, bh, gamma, beta, wo, bo)
    return out_pad[:, :num_classes]


def mlp_forward(params, x):
    """Pallas implementation of MLP.forward (multi_model=False, drop_ratio=0)."""
    # TODO(synk): Dropout with drop_ratio > 0 (training RNG) not implemented;
    # the module default drop_ratio=0 makes it the identity.
    return _forward_impl(
        x, params["wh"], params["bh"], params["gamma"], params["beta"],
        params["wo"], params["bo"], num_classes=params["num_classes"])


# ----------------------------------------------------------------------------
# Parameter construction: PyTorch-Linear-style uniform init, pre-transposed,
# stacked per layer, and zero-padded to 128-lane feature widths.
# ----------------------------------------------------------------------------
def init_mlp_params(key, num_classes, input_dim, num_mlp_layers, emb_dim):
    d_pad = max(_round_up(input_dim, _LANE), _round_up(emb_dim, _LANE))
    c_pad = _round_up(num_classes, _LANE)

    wh = jnp.zeros((num_mlp_layers, d_pad, d_pad), jnp.float32)
    bh = jnp.zeros((num_mlp_layers, 1, d_pad), jnp.float32)
    gamma = jnp.zeros((num_mlp_layers, 1, d_pad), jnp.float32)  # padded lanes: 0
    beta = jnp.zeros((num_mlp_layers, 1, d_pad), jnp.float32)

    d_in = input_dim
    for l in range(num_mlp_layers):
        key, kw, kb = jax.random.split(key, 3)
        bound = 1.0 / float(d_in) ** 0.5
        w = jax.random.uniform(kw, (emb_dim, d_in), jnp.float32, -bound, bound)
        b = jax.random.uniform(kb, (emb_dim,), jnp.float32, -bound, bound)
        wh = wh.at[l, :d_in, :emb_dim].set(w.T)        # pre-transposed (D_in, D_out)
        bh = bh.at[l, 0, :emb_dim].set(b)
        gamma = gamma.at[l, 0, :emb_dim].set(1.0)
        d_in = emb_dim

    key, kw, kb = jax.random.split(key, 3)
    bound = 1.0 / float(emb_dim) ** 0.5
    w_out = jax.random.uniform(kw, (num_classes, emb_dim), jnp.float32, -bound, bound)
    b_out = jax.random.uniform(kb, (num_classes,), jnp.float32, -bound, bound)
    wo = jnp.zeros((d_pad, c_pad), jnp.float32).at[:emb_dim, :num_classes].set(w_out.T)
    bo = jnp.zeros((1, c_pad), jnp.float32).at[0, :num_classes].set(b_out)

    return {"wh": wh, "bh": bh, "gamma": gamma, "beta": beta,
            "wo": wo, "bo": bo, "num_classes": num_classes}


# ----------------------------------------------------------------------------
# Pure-JAX reference (same padded params; padded lanes contribute nothing)
# ----------------------------------------------------------------------------
def _reference_forward(params, x):
    wh, bh = params["wh"], params["bh"]
    gamma, beta = params["gamma"], params["beta"]
    wo, bo = params["wo"], params["bo"]
    nc = params["num_classes"]
    d_pad = wh.shape[1]
    h = jnp.zeros((x.shape[0], d_pad), jnp.float32).at[:, : x.shape[1]].set(x)
    for l in range(wh.shape[0]):
        h = h @ wh[l] + bh[l]
        mean = h.mean(axis=0, keepdims=True)
        var = ((h - mean) ** 2).mean(axis=0, keepdims=True)
        h = jnp.maximum((h - mean) * jax.lax.rsqrt(var + _BN_EPS) * gamma[l] + beta[l],
                        0.0)
    logits = (h @ wo + bo)[:, :nc]
    return jax.nn.log_softmax(logits, axis=-1)


# ----------------------------------------------------------------------------
# Demo
# ----------------------------------------------------------------------------
if __name__ == "__main__":
    num_classes = 10
    input_dim = 16
    num_mlp_layers = 2
    emb_dim = 32
    batch = 8

    key = jax.random.PRNGKey(0)
    key, kx, kp = jax.random.split(key, 3)
    x = jax.random.normal(kx, (batch, input_dim), jnp.float32)
    params = init_mlp_params(kp, num_classes, input_dim, num_mlp_layers, emb_dim)

    out = mlp_forward(params, x)
    out = jax.block_until_ready(out)

    assert out.shape == (batch, num_classes)
    # log_softmax rows should exp-sum to ~1.
    row_sums = jnp.sum(jnp.exp(out), axis=-1)
    assert bool(jnp.all(jnp.abs(row_sums - 1.0) < 1e-4))
    # Match the pure-JAX reference of the same forward pass.
    ref = _reference_forward(params, x)
    assert bool(jnp.all(jnp.abs(out - ref) < 1e-4)), float(jnp.max(jnp.abs(out - ref)))

    print("KERNEL_OK")
</pallas_src>

<mosaic_0001>
module attributes {stable_mosaic.version = 11 : i64} {
  func.func @_mlp_fused_kernel(%arg0: memref<8x128xf32, #tpu.memory_space<vmem>>, %arg1: memref<2x128x128xf32, #tpu.memory_space<vmem>>, %arg2: memref<2x1x128xf32, #tpu.memory_space<vmem>>, %arg3: memref<2x1x128xf32, #tpu.memory_space<vmem>>, %arg4: memref<2x1x128xf32, #tpu.memory_space<vmem>>, %arg5: memref<128x128xf32, #tpu.memory_space<vmem>>, %arg6: memref<1x128xf32, #tpu.memory_space<vmem>>, %arg7: memref<8x128xf32, #tpu.memory_space<vmem>>) attributes {dimension_semantics = [], scalar_prefetch = 0 : i64, scratch_operands = 0 : i64, tpu.core_type = #tpu.core_type<tc>} {
    %c0 = arith.constant 0 : index
    %c0_0 = arith.constant 0 : index
    %0 = vector.load %arg0[%c0, %c0_0] : memref<8x128xf32, #tpu.memory_space<vmem>>, vector<8x128xf32>
    %c0_1 = arith.constant 0 : index
    %c0_2 = arith.constant 0 : index
    %c0_3 = arith.constant 0 : index
    %1 = vector.load %arg1[%c0_1, %c0_2, %c0_3] : memref<2x128x128xf32, #tpu.memory_space<vmem>>, vector<1x128x128xf32>
    %2 = vector.shape_cast %1 : vector<1x128x128xf32> to vector<128x128xf32>
    %cst = arith.constant dense<0.000000e+00> : vector<8x128xf32>
    %3 = tpu.matmul %0, %2, %cst {dimension_numbers = #tpu.dot_dimension_numbers<[1], [0], [0], [1], [0, 0, 1, 1], [], []>} : vector<8x128xf32>, vector<128x128xf32>, vector<8x128xf32> -> vector<8x128xf32>
    %c0_4 = arith.constant 0 : index
    %c0_5 = arith.constant 0 : index
    %c0_6 = arith.constant 0 : index
    %4 = vector.load %arg2[%c0_4, %c0_5, %c0_6] : memref<2x1x128xf32, #tpu.memory_space<vmem>>, vector<1x1x128xf32>
    %5 = vector.shape_cast %4 : vector<1x1x128xf32> to vector<1x128xf32>
    %6 = vector.broadcast %5 : vector<1x128xf32> to vector<8x128xf32>
    %7 = arith.addf %3, %6 : vector<8x128xf32>
    %cst_7 = arith.constant dense<0.000000e+00> : vector<128xf32>
    %8 = vector.multi_reduction <add>, %7, %cst_7 [0] : vector<8x128xf32> to vector<128xf32>
    %9 = vector.shape_cast %8 : vector<128xf32> to vector<1x128xf32>
    %cst_8 = arith.constant 8.000000e+00 : f32
    %10 = vector.broadcast %cst_8 : f32 to vector<1x128xf32>
    %11 = arith.divf %9, %10 : vector<1x128xf32>
    %12 = vector.broadcast %11 : vector<1x128xf32> to vector<8x128xf32>
    %13 = arith.subf %7, %12 : vector<8x128xf32>
    %14 = arith.mulf %13, %13 : vector<8x128xf32>
    %cst_9 = arith.constant dense<0.000000e+00> : vector<128xf32>
    %15 = vector.multi_reduction <add>, %14, %cst_9 [0] : vector<8x128xf32> to vector<128xf32>
    %16 = vector.shape_cast %15 : vector<128xf32> to vector<1x128xf32>
    %cst_10 = arith.constant 8.000000e+00 : f32
    %17 = vector.broadcast %cst_10 : f32 to vector<1x128xf32>
    %18 = arith.divf %16, %17 : vector<1x128xf32>
    %c0_11 = arith.constant 0 : index
    %c0_12 = arith.constant 0 : index
    %c0_13 = arith.constant 0 : index
    %19 = vector.load %arg3[%c0_11, %c0_12, %c0_13] : memref<2x1x128xf32, #tpu.memory_space<vmem>>, vector<1x1x128xf32>
    %20 = vector.shape_cast %19 : vector<1x1x128xf32> to vector<1x128xf32>
    %cst_14 = arith.constant 9.99999974E-6 : f32
    %21 = vector.broadcast %cst_14 : f32 to vector<1x128xf32>
    %22 = arith.addf %18, %21 : vector<1x128xf32>
    %23 = math.rsqrt %22 : vector<1x128xf32>
    %24 = arith.mulf %20, %23 : vector<1x128xf32>
    %c0_15 = arith.constant 0 : index
    %c0_16 = arith.constant 0 : index
    %c0_17 = arith.constant 0 : index
    %25 = vector.load %arg4[%c0_15, %c0_16, %c0_17] : memref<2x1x128xf32, #tpu.memory_space<vmem>>, vector<1x1x128xf32>
    %26 = vector.shape_cast %25 : vector<1x1x128xf32> to vector<1x128xf32>
    %27 = arith.mulf %11, %24 : vector<1x128xf32>
    %28 = arith.subf %26, %27 : vector<1x128xf32>
    %29 = vector.broadcast %24 : vector<1x128xf32> to vector<8x128xf32>
    %30 = arith.mulf %7, %29 : vector<8x128xf32>
    %31 = vector.broadcast %28 : vector<1x128xf32> to vector<8x128xf32>
    %32 = arith.addf %30, %31 : vector<8x128xf32>
    %cst_18 = arith.constant 0.000000e+00 : f32
    %33 = vector.broadcast %cst_18 : f32 to vector<8x128xf32>
    %34 = arith.maximumf %32, %33 : vector<8x128xf32>
    %c1 = arith.constant 1 : index
    %c0_19 = arith.constant 0 : index
    %c0_20 = arith.constant 0 : index
    %35 = vector.load %arg1[%c1, %c0_19, %c0_20] : memref<2x128x128xf32, #tpu.memory_space<vmem>>, vector<1x128x128xf32>
    %36 = vector.shape_cast %35 : vector<1x128x128xf32> to vector<128x128xf32>
    %cst_21 = arith.constant dense<0.000000e+00> : vector<8x128xf32>
    %37 = tpu.matmul %34, %36, %cst_21 {dimension_numbers = #tpu.dot_dimension_numbers<[1], [0], [0], [1], [0, 0, 1, 1], [], []>} : vector<8x128xf32>, vector<128x128xf32>, vector<8x128xf32> -> vector<8x128xf32>
    %c1_22 = arith.constant 1 : index
    %c0_23 = arith.constant 0 : index
    %c0_24 = arith.constant 0 : index
    %38 = vector.load %arg2[%c1_22, %c0_23, %c0_24] : memref<2x1x128xf32, #tpu.memory_space<vmem>>, vector<1x1x128xf32>
    %39 = vector.shape_cast %38 : vector<1x1x128xf32> to vector<1x128xf32>
    %40 = vector.broadcast %39 : vector<1x128xf32> to vector<8x128xf32>
    %41 = arith.addf %37, %40 : vector<8x128xf32>
    %cst_25 = arith.constant dense<0.000000e+00> : vector<128xf32>
    %42 = vector.multi_reduction <add>, %41, %cst_25 [0] : vector<8x128xf32> to vector<128xf32>
    %43 = vector.shape_cast %42 : vector<128xf32> to vector<1x128xf32>
    %cst_26 = arith.constant 8.000000e+00 : f32
    %44 = vector.broadcast %cst_26 : f32 to vector<1x128xf32>
    %45 = arith.divf %43, %44 : vector<1x128xf32>
    %46 = vector.broadcast %45 : vector<1x128xf32> to vector<8x128xf32>
    %47 = arith.subf %41, %46 : vector<8x128xf32>
    %48 = arith.mulf %47, %47 : vector<8x128xf32>
    %cst_27 = arith.constant dense<0.000000e+00> : vector<128xf32>
    %49 = vector.multi_reduction <add>, %48, %cst_27 [0] : vector<8x128xf32> to vector<128xf32>
    %50 = vector.shape_cast %49 : vector<128xf32> to vector<1x128xf32>
    %cst_28 = arith.constant 8.000000e+00 : f32
    %51 = vector.broadcast %cst_28 : f32 to vector<1x128xf32>
    %52 = arith.divf %50, %51 : vector<1x128xf32>
    %c1_29 = arith.constant 1 : index
    %c0_30 = arith.constant 0 : index
    %c0_31 = arith.constant 0 : index
    %53 = vector.load %arg3[%c1_29, %c0_30, %c0_31] : memref<2x1x128xf32, #tpu.memory_space<vmem>>, vector<1x1x128xf32>
    %54 = vector.shape_cast %53 : vector<1x1x128xf32> to vector<1x128xf32>
    %cst_32 = arith.constant 9.99999974E-6 : f32
    %55 = vector.broadcast %cst_32 : f32 to vector<1x128xf32>
    %56 = arith.addf %52, %55 : vector<1x128xf32>
    %57 = math.rsqrt %56 : vector<1x128xf32>
    %58 = arith.mulf %54, %57 : vector<1x128xf32>
    %c1_33 = arith.constant 1 : index
    %c0_34 = arith.constant 0 : index
    %c0_35 = arith.constant 0 : index
    %59 = vector.load %arg4[%c1_33, %c0_34, %c0_35] : memref<2x1x128xf32, #tpu.memory_space<vmem>>, vector<1x1x128xf32>
    %60 = vector.shape_cast %59 : vector<1x1x128xf32> to vector<1x128xf32>
    %61 = arith.mulf %45, %58 : vector<1x128xf32>
    %62 = arith.subf %60, %61 : vector<1x128xf32>
    %63 = vector.broadcast %58 : vector<1x128xf32> to vector<8x128xf32>
    %64 = arith.mulf %41, %63 : vector<8x128xf32>
    %65 = vector.broadcast %62 : vector<1x128xf32> to vector<8x128xf32>
    %66 = arith.addf %64, %65 : vector<8x128xf32>
    %cst_36 = arith.constant 0.000000e+00 : f32
    %67 = vector.broadcast %cst_36 : f32 to vector<8x128xf32>
    %68 = arith.maximumf %66, %67 : vector<8x128xf32>
    %c0_37 = arith.constant 0 : index
    %c0_38 = arith.constant 0 : index
    %69 = vector.load %arg5[%c0_37, %c0_38] : memref<128x128xf32, #tpu.memory_space<vmem>>, vector<128x128xf32>
    %cst_39 = arith.constant dense<0.000000e+00> : vector<8x128xf32>
    %70 = tpu.matmul %68, %69, %cst_39 {dimension_numbers = #tpu.dot_dimension_numbers<[1], [0], [0], [1], [0, 0, 1, 1], [], []>} : vector<8x128xf32>, vector<128x128xf32>, vector<8x128xf32> -> vector<8x128xf32>
    %c0_40 = arith.constant 0 : index
    %c0_41 = arith.constant 0 : index
    %71 = vector.load %arg6[%c0_40, %c0_41] : memref<1x128xf32, #tpu.memory_space<vmem>>, vector<1x128xf32>
    %72 = vector.broadcast %71 : vector<1x128xf32> to vector<8x128xf32>
    %73 = arith.addf %70, %72 : vector<8x128xf32>
    %74 = tpu.iota {dimensions = array<i32: 1>} : vector<8x128xi32>
    %c10_i32 = arith.constant 10 : i32
    %75 = vector.broadcast %c10_i32 : i32 to vector<8x128xi32>
    %76 = arith.cmpi slt, %74, %75 : vector<8x128xi32>
    %cst_42 = arith.constant 0xFF800000 : f32
    %77 = vector.broadcast %cst_42 : f32 to vector<8x128xf32>
    %78 = arith.select %76, %73, %77 : vector<8x128xi1>, vector<8x128xf32>
    %cst_43 = arith.constant dense<0xFF800000> : vector<8xf32>
    %79 = vector.multi_reduction <maximumf>, %78, %cst_43 [1] : vector<8x128xf32> to vector<8xf32>
    %80 = vector.shape_cast %79 : vector<8xf32> to vector<8x1xf32>
    %81 = vector.broadcast %80 : vector<8x1xf32> to vector<8x128xf32>
    %82 = arith.subf %78, %81 : vector<8x128xf32>
    %83 = math.exp %82 : vector<8x128xf32>
    %cst_44 = arith.constant dense<0.000000e+00> : vector<8xf32>
    %84 = vector.multi_reduction <add>, %83, %cst_44 [1] : vector<8x128xf32> to vector<8xf32>
    %85 = vector.shape_cast %84 : vector<8xf32> to vector<8x1xf32>
    %86 = math.log %85 : vector<8x1xf32>
    %87 = arith.addf %80, %86 : vector<8x1xf32>
    %88 = vector.broadcast %87 : vector<8x1xf32> to vector<8x128xf32>
    %89 = arith.subf %78, %88 : vector<8x128xf32>
    %c0_45 = arith.constant 0 : index
    %c0_46 = arith.constant 0 : index
    %90 = vector.load %arg7[%c0_45, %c0_46] : memref<8x128xf32, #tpu.memory_space<vmem>>, vector<8x128xf32>
    tpu.vector_store %arg7[%c0_45, %c0_46], %89 {strides = array<i32>} : memref<8x128xf32, #tpu.memory_space<vmem>>, vector<8x128xf32>,
    return
  }
}

</mosaic_0001>

<llo_original>
// kernel: _forward_impl.1
$region0: #{_forward_impl.1}
  #allocation0 [shape = 'u32[]', space=smem, size = 0x4, offset = 0x4, fixed_abs, tag = 'smem constant byte address 0x4 - core index']
  #allocation1 [shape = 'u32[144,128]{1,0:T(1,128)}', space=vmem, size = 0x12000, scoped, tag = 'internal scratch']
  %s0 = inlined_call_operand.vmem [shape: f32[8,128], index: 0, kind: input, shape index: {}]
  %s1 = inlined_call_operand.hbm [shape: f32[2,128,128], index: 1, kind: input, shape index: {}]
  %s2 = inlined_call_operand.vmem [shape: f32[2,1,128], index: 2, kind: input, shape index: {}]
  %s3 = inlined_call_operand.vmem [shape: f32[2,1,128], index: 3, kind: input, shape index: {}]
  %s4 = inlined_call_operand.vmem [shape: f32[2,1,128], index: 4, kind: input, shape index: {}]
  %s5 = inlined_call_operand.hbm [shape: f32[128,128], index: 5, kind: input, shape index: {}]
  %s6 = inlined_call_operand.vmem [shape: f32[1,128], index: 6, kind: input, shape index: {}]
  %s7 = inlined_call_operand.hbm [shape: f32[8,128], index: 7, kind: output, shape index: {}]
  %s8 = sld [smem:[#allocation0]]
  $region46: #{_forward_impl.1} parent=0
    _
  %s10 = ssub.s32 1, %s8
  %s11 = scalar_select 0, %s10, %s8
  $region1: #{_forward_impl.1} parent=0
    #allocation2 [shape = 'u8[131072]{0}', space=vmem, size = 0x20000, scoped, tag = 'input window, operand 1, single buffered']
    #allocation3 [shape = 's32[1]{0}', space=sflag, size = 0x4, scoped, tag = 'scoped memory for _forward_impl.1']
    #allocation4 [shape = 's32[1]{0}', space=sflag, size = 0x4, scoped, tag = 'scoped memory for _forward_impl.1']
    #allocation5 [shape = 'u8[65536]{0}', space=vmem, size = 0x10000, scoped, tag = 'input window, operand 5, single buffered']
    #allocation6 [shape = 's32[1]{0}', space=sflag, size = 0x4, scoped, tag = 'scoped memory for _forward_impl.1']
    #allocation7 [shape = 'u8[4096]{0}', space=vmem, size = 0x1000, scoped, tag = 'output window, operand 0, single buffered']
    %12 = vsyncpa [#allocation3], 0
    %13 = vsyncpa [#allocation6], 0
    %14 = vsyncpa [#allocation4], 0
    // Predicated region
    $region2: #{_forward_impl.1} parent=1 // pred_check
      _
    $region3: #{_forward_impl.1} parent=1 // pred_check_branch
      %16 = sbr.rel (0) target = $region5
    $region4: #{_forward_impl.1} parent=1 // pred_region
      _
    $region5: #{_forward_impl.1} parent=1 // pred_fallthru
      _
    // Predicated region
    $region6: #{_forward_impl.1} parent=1 // pred_check
      _
    $region7: #{_forward_impl.1} parent=1 // pred_check_branch
      %18 = sbr.rel (0) target = $region9
    $region8: #{_forward_impl.1} parent=1 // pred_region
      %s20 = ssub.s32 4096, 4096
      %21 = vsyncadd [#allocation3], %s20
      %s22 = sshll.u32 [#allocation2], 4
      %s23 = int_to_ptr.vmem [resolvable:$true] %s22
      %28 = dma.hbm_to_vmem [thread:$0]  %s1, 4096, %s23, [#allocation3], 128, 128, 8
    $region9: #{_forward_impl.1} parent=1 // pred_fallthru
      _
    // Predicated region
    $region10: #{_forward_impl.1} parent=1 // pred_check
      _
    $region11: #{_forward_impl.1} parent=1 // pred_check_branch
      %30 = sbr.rel (0) target = $region13
    $region12: #{_forward_impl.1} parent=1 // pred_region
      _
    $region13: #{_forward_impl.1} parent=1 // pred_fallthru
      _
    // Predicated region
    $region14: #{_forward_impl.1} parent=1 // pred_check
      _
    $region15: #{_forward_impl.1} parent=1 // pred_check_branch
      %32 = sbr.rel (0) target = $region17
    $region16: #{_forward_impl.1} parent=1 // pred_region
      _
    $region17: #{_forward_impl.1} parent=1 // pred_fallthru
      _
    // Predicated region
    $region18: #{_forward_impl.1} parent=1 // pred_check
      _
    $region19: #{_forward_impl.1} parent=1 // pred_check_branch
      %34 = sbr.rel (0) target = $region21
    $region20: #{_forward_impl.1} parent=1 // pred_region
      _
    $region21: #{_forward_impl.1} parent=1 // pred_fallthru
      _
    // Predicated region
    $region22: #{_forward_impl.1} parent=1 // pred_check
      _
    $region23: #{_forward_impl.1} parent=1 // pred_check_branch
      %36 = sbr.rel (0) target = $region25
    $region24: #{_forward_impl.1} parent=1 // pred_region
      %s38 = ssub.s32 2048, 2048
      %39 = vsyncadd [#allocation6], %s38
      %s40 = sshll.u32 [#allocation5], 4
      %s41 = int_to_ptr.vmem [resolvable:$true] %s40
      %46 = dma.hbm_to_vmem [thread:$0]  %s5, 2048, %s41, [#allocation6], 128, 128, 8
    $region25: #{_forward_impl.1} parent=1 // pred_fallthru
      _
    // Predicated region
    $region26: #{_forward_impl.1} parent=1 // pred_check
      _
    $region27: #{_forward_impl.1} parent=1 // pred_check_branch
      %48 = sbr.rel (0) target = $region29
    $region28: #{_forward_impl.1} parent=1 // pred_region
      _
    $region29: #{_forward_impl.1} parent=1 // pred_fallthru
      _
    // Predicated region
    $region30: #{_forward_impl.1} parent=1 // pred_check
      _
    $region31: #{_forward_impl.1} parent=1 // pred_check_branch
      %50 = sbr.rel (0) target = $region33
    $region32: #{_forward_impl.1} parent=1 // pred_region
      %51 = dma.done [#allocation3], 4096
    $region33: #{_forward_impl.1} parent=1 // pred_fallthru
      _
    // Predicated region
    $region34: #{_forward_impl.1} parent=1 // pred_check
      _
    $region35: #{_forward_impl.1} parent=1 // pred_check_branch
      %53 = sbr.rel (0) target = $region37
    $region36: #{_forward_impl.1} parent=1 // pred_region
      %54 = dma.done [#allocation6], 2048
    $region37: #{_forward_impl.1} parent=1 // pred_fallthru
      _
    %v55 = vld [vmem:[%s0] sm:$0xff]
    %v56 = vld [vmem:[#allocation2] sm:$0xff]
    %v57 = vld [vmem:[#allocation2 + $0x8] sm:$0xff]
    %v58 = vld [vmem:[#allocation2 + $0x10] sm:$0xff]
    %v59 = vld [vmem:[#allocation2 + $0x18] sm:$0xff]
    %v60 = vld [vmem:[#allocation2 + $0x20] sm:$0xff]
    %v61 = vld [vmem:[#allocation2 + $0x28] sm:$0xff]
    %v62 = vld [vmem:[#allocation2 + $0x30] sm:$0xff]
    %v63 = vld [vmem:[#allocation2 + $0x38] sm:$0xff]
    %v64 = vld [vmem:[#allocation2 + $0x40] sm:$0xff]
    %v65 = vld [vmem:[#allocation2 + $0x48] sm:$0xff]
    %v66 = vld [vmem:[#allocation2 + $0x50] sm:$0xff]
    %v67 = vld [vmem:[#allocation2 + $0x58] sm:$0xff]
    %v68 = vld [vmem:[#allocation2 + $0x60] sm:$0xff]
    %v69 = vld [vmem:[#allocation2 + $0x68] sm:$0xff]
    %v70 = vld [vmem:[#allocation2 + $0x70] sm:$0xff]
    %v71 = vld [vmem:[#allocation2 + $0x78] sm:$0xff]
    %v72 = vld [vmem:[%s2] sm:$0x1]
    %v74 = vlaneseq
    %v75 = vshrl.u32 %v74, 7
    %v76 = vsub.s32 0, %v75
    %v77 = vrot.slane %v72, %v76
    %79 = vmatprep.subr.mxu0 0.0
    %80 = vmatpush1.msra.mxu0 %v71
    %81 = vmatprep.subr.mxu0 0.0
    %82 = vmatpush1.msra.mxu0 %v70
    %83 = vmatprep.subr.mxu0 0.0
    %84 = vmatpush1.msra.mxu0 %v69
    %85 = vmatprep.subr.mxu0 0.0
    %86 = vmatpush1.msra.mxu0 %v68
    %87 = vmatprep.subr.mxu0 0.0
    %88 = vmatpush1.msra.mxu0 %v67
    %89 = vmatprep.subr.mxu0 0.0
    %90 = vmatpush1.msra.mxu0 %v66
    %91 = vmatprep.subr.mxu0 0.0
    %92 = vmatpush1.msra.mxu0 %v65
    %93 = vmatprep.subr.mxu0 0.0
    %94 = vmatpush1.msra.mxu0 %v64
    %95 = vmatprep.subr.mxu0 0.0
    %96 = vmatpush1.msra.mxu0 %v63
    %97 = vmatprep.subr.mxu0 0.0
    %98 = vmatpush1.msra.mxu0 %v62
    %99 = vmatprep.subr.mxu0 0.0
    %100 = vmatpush1.msra.mxu0 %v61
    %101 = vmatprep.subr.mxu0 0.0
    %102 = vmatpush1.msra.mxu0 %v60
    %103 = vmatprep.subr.mxu0 0.0
    %104 = vmatpush1.msra.mxu0 %v59
    %105 = vmatprep.subr.mxu0 0.0
    %106 = vmatpush1.msra.mxu0 %v58
    %107 = vmatprep.subr.mxu0 0.0
    %108 = vmatpush1.msra.mxu0 %v57
    %109 = vmatprep.subr.mxu0 0.0
    %110 = vmatpush1.msra.mxu0 %v56
    %111 = vmatprep.subr.mxu0 0.0
    %112 = vmatpush2.msra.mxu0 0.0
    %113 = vmatprep.subr.mxu0 0.0
    %114 = vmatpush2.msra.mxu0 0.0
    %115 = vmatprep.subr.mxu0 0.0
    %116 = vmatpush2.msra.mxu0 0.0
    %117 = vmatprep.subr.mxu0 0.0
    %118 = vmatpush2.msra.mxu0 0.0
    %119 = vmatprep.subr.mxu0 0.0
    %120 = vmatpush2.msra.mxu0 0.0
    %121 = vmatprep.subr.mxu0 0.0
    %122 = vmatpush2.msra.mxu0 0.0
    %123 = vmatprep.subr.mxu0 0.0
    %124 = vmatpush2.msra.mxu0 0.0
    %125 = vmatprep.subr.mxu0 0.0
    %126 = vmatpush2.msra.mxu0 0.0
    %127 = vmatprep.subr.mxu0 0.0
    %128 = vmatpush2.msra.mxu0 0.0
    %129 = vmatprep.subr.mxu0 0.0
    %130 = vmatpush2.msra.mxu0 0.0
    %131 = vmatprep.subr.mxu0 0.0
    %132 = vmatpush2.msra.mxu0 0.0
    %133 = vmatprep.subr.mxu0 0.0
    %134 = vmatpush2.msra.mxu0 0.0
    %135 = vmatprep.subr.mxu0 0.0
    %136 = vmatpush2.msra.mxu0 0.0
    %137 = vmatprep.subr.mxu0 0.0
    %138 = vmatpush2.msra.mxu0 0.0
    %139 = vmatprep.subr.mxu0 0.0
    %140 = vmatpush2.msra.mxu0 0.0
    %141 = vmatprep.subr.mxu0 0.0
    %142 = vmatpush2.msra.mxu0 0.0
    %143 = vmatprep.mubr.f32.mxu0 0.0
    %144 = vmatmul.mubr.f32.gmra.mxu0 %v55
    %v145 = vpop.f32.mrf.mxu0
    %v146 = vadd.f32 %v77, %v145
    %v147 = vpop.f32.mrf.mxu0
    %148 = vdwg.mxu0
    %v149 = vrot.slane %v146, 4
    %v150 = vadd.f32 %v146, %v149
    %v151 = vrot.slane %v150, 2
    %v152 = vadd.f32 %v150, %v151
    %v153 = vrot.slane %v152, 1
    %v154 = vadd.f32 %v152, %v153
    %v155 = vrcp.pop 8.0
    %v156 = vmul.f32 %v154, %v155
    %v157 = vsub.f32 %v146, %v156
    %v158 = vmul.f32 %v157, %v157
    %v159 = vrot.slane %v158, 4
    %v160 = vadd.f32 %v158, %v159
    %v161 = vrot.slane %v160, 2
    %v162 = vadd.f32 %v160, %v161
    %v163 = vrot.slane %v162, 1
    %v164 = vadd.f32 %v162, %v163
    %v165 = vmul.f32 %v164, %v155
    %v166 = vld [vmem:[%s3] sm:$0x1]
    %v167 = vadd.f32 %v165, 1e-05
    %v168 = vrsqrt.pop %v167
    %v169 = vmul.f32 %v166, %v168
    %v170 = vld [vmem:[%s4] sm:$0x1]
    %v171 = vmul.f32 %v156, %v169
    %v172 = vsub.f32 %v170, %v171
    %v174 = vlaneseq
    %v175 = vshrl.u32 %v174, 7
    %v176 = vsub.s32 0, %v175
    %v177 = vrot.slane %v169, %v176
    %v179 = vmul.f32 %v146, %v177
    %v181 = vlaneseq
    %v182 = vshrl.u32 %v181, 7
    %v183 = vsub.s32 0, %v182
    %v184 = vrot.slane %v172, %v183
    %v186 = vadd.f32 %v179, %v184
    %v187 = vmax.f32 %v186, 0.0
    %s188 = scalar_lea.vmem [#allocation2], 128
    %v189 = vld [vmem:[%s188] sm:$0xff]
    %v190 = vld [vmem:[%s188 + $0x8] sm:$0xff]
    %v191 = vld [vmem:[%s188 + $0x10] sm:$0xff]
    %v192 = vld [vmem:[%s188 + $0x18] sm:$0xff]
    %v193 = vld [vmem:[%s188 + $0x20] sm:$0xff]
    %v194 = vld [vmem:[%s188 + $0x28] sm:$0xff]
    %v195 = vld [vmem:[%s188 + $0x30] sm:$0xff]
    %v196 = vld [vmem:[%s188 + $0x38] sm:$0xff]
    %v197 = vld [vmem:[%s188 + $0x40] sm:$0xff]
    %v198 = vld [vmem:[%s188 + $0x48] sm:$0xff]
    %v199 = vld [vmem:[%s188 + $0x50] sm:$0xff]
    %v200 = vld [vmem:[%s188 + $0x58] sm:$0xff]
    %v201 = vld [vmem:[%s188 + $0x60] sm:$0xff]
    %v202 = vld [vmem:[%s188 + $0x68] sm:$0xff]
    %v203 = vld [vmem:[%s188 + $0x70] sm:$0xff]
    %v204 = vld [vmem:[%s188 + $0x78] sm:$0xff]
    %s205 = scalar_lea.vmem %s2, 1
    %v206 = vld [vmem:[%s205] sm:$0x1]
    %v208 = vlaneseq
    %v209 = vshrl.u32 %v208, 7
    %v210 = vsub.s32 0, %v209
    %v211 = vrot.slane %v206, %v210
    %213 = vmatprep.subr.mxu0 0.0
    %214 = vmatpush1.msra.mxu0 %v204
    %215 = vmatprep.subr.mxu0 0.0
    %216 = vmatpush1.msra.mxu0 %v203
    %217 = vmatprep.subr.mxu0 0.0
    %218 = vmatpush1.msra.mxu0 %v202
    %219 = vmatprep.subr.mxu0 0.0
    %220 = vmatpush1.msra.mxu0 %v201
    %221 = vmatprep.subr.mxu0 0.0
    %222 = vmatpush1.msra.mxu0 %v200
    %223 = vmatprep.subr.mxu0 0.0
    %224 = vmatpush1.msra.mxu0 %v199
    %225 = vmatprep.subr.mxu0 0.0
    %226 = vmatpush1.msra.mxu0 %v198
    %227 = vmatprep.subr.mxu0 0.0
    %228 = vmatpush1.msra.mxu0 %v197
    %229 = vmatprep.subr.mxu0 0.0
    %230 = vmatpush1.msra.mxu0 %v196
    %231 = vmatprep.subr.mxu0 0.0
    %232 = vmatpush1.msra.mxu0 %v195
    %233 = vmatprep.subr.mxu0 0.0
    %234 = vmatpush1.msra.mxu0 %v194
    %235 = vmatprep.subr.mxu0 0.0
    %236 = vmatpush1.msra.mxu0 %v193
    %237 = vmatprep.subr.mxu0 0.0
    %238 = vmatpush1.msra.mxu0 %v192
    %239 = vmatprep.subr.mxu0 0.0
    %240 = vmatpush1.msra.mxu0 %v191
    %241 = vmatprep.subr.mxu0 0.0
    %242 = vmatpush1.msra.mxu0 %v190
    %243 = vmatprep.subr.mxu0 0.0
    %244 = vmatpush1.msra.mxu0 %v189
    %245 = vmatprep.subr.mxu0 0.0
    %246 = vmatpush2.msra.mxu0 0.0
    %247 = vmatprep.subr.mxu0 0.0
    %248 = vmatpush2.msra.mxu0 0.0
    %249 = vmatprep.subr.mxu0 0.0
    %250 = vmatpush2.msra.mxu0 0.0
    %251 = vmatprep.subr.mxu0 0.0
    %252 = vmatpush2.msra.mxu0 0.0
    %253 = vmatprep.subr.mxu0 0.0
    %254 = vmatpush2.msra.mxu0 0.0
    %255 = vmatprep.subr.mxu0 0.0
    %256 = vmatpush2.msra.mxu0 0.0
    %257 = vmatprep.subr.mxu0 0.0
    %258 = vmatpush2.msra.mxu0 0.0
    %259 = vmatprep.subr.mxu0 0.0
    %260 = vmatpush2.msra.mxu0 0.0
    %261 = vmatprep.subr.mxu0 0.0
    %262 = vmatpush2.msra.mxu0 0.0
    %263 = vmatprep.subr.mxu0 0.0
    %264 = vmatpush2.msra.mxu0 0.0
    %265 = vmatprep.subr.mxu0 0.0
    %266 = vmatpush2.msra.mxu0 0.0
    %267 = vmatprep.subr.mxu0 0.0
    %268 = vmatpush2.msra.mxu0 0.0
    %269 = vmatprep.subr.mxu0 0.0
    %270 = vmatpush2.msra.mxu0 0.0
    %271 = vmatprep.subr.mxu0 0.0
    %272 = vmatpush2.msra.mxu0 0.0
    %273 = vmatprep.subr.mxu0 0.0
    %274 = vmatpush2.msra.mxu0 0.0
    %275 = vmatprep.subr.mxu0 0.0
    %276 = vmatpush2.msra.mxu0 0.0
    %277 = vmatprep.mubr.f32.mxu0 0.0
    %278 = vmatmul.mubr.f32.gmra.mxu0 %v187
    %v279 = vpop.f32.mrf.mxu0
    %v280 = vadd.f32 %v211, %v279
    %v281 = vpop.f32.mrf.mxu0
    %282 = vdwg.mxu0
    %v283 = vrot.slane %v280, 4
    %v284 = vadd.f32 %v280, %v283
    %v285 = vrot.slane %v284, 2
    %v286 = vadd.f32 %v284, %v285
    %v287 = vrot.slane %v286, 1
    %v288 = vadd.f32 %v286, %v287
    %v289 = vmul.f32 %v288, %v155
    %v290 = vsub.f32 %v280, %v289
    %v291 = vmul.f32 %v290, %v290
    %v292 = vrot.slane %v291, 4
    %v293 = vadd.f32 %v291, %v292
    %v294 = vrot.slane %v293, 2
    %v295 = vadd.f32 %v293, %v294
    %v296 = vrot.slane %v295, 1
    %v297 = vadd.f32 %v295, %v296
    %v298 = vmul.f32 %v297, %v155
    %s299 = scalar_lea.vmem %s3, 1
    %v300 = vld [vmem:[%s299] sm:$0x1]
    %v301 = vadd.f32 %v298, 1e-05
    %v302 = vrsqrt.pop %v301
    %v303 = vmul.f32 %v300, %v302
    %s304 = scalar_lea.vmem %s4, 1
    %v305 = vld [vmem:[%s304] sm:$0x1]
    %v306 = vmul.f32 %v289, %v303
    %v307 = vsub.f32 %v305, %v306
    %v309 = vlaneseq
    %v310 = vshrl.u32 %v309, 7
    %v311 = vsub.s32 0, %v310
    %v312 = vrot.slane %v303, %v311
    %v314 = vmul.f32 %v280, %v312
    %v316 = vlaneseq
    %v317 = vshrl.u32 %v316, 7
    %v318 = vsub.s32 0, %v317
    %v319 = vrot.slane %v307, %v318
    %v321 = vadd.f32 %v314, %v319
    %v322 = vmax.f32 %v321, 0.0
    %v323 = vld [vmem:[#allocation5] sm:$0xff]
    %v324 = vld [vmem:[#allocation5 + $0x8] sm:$0xff]
    %v325 = vld [vmem:[#allocation5 + $0x10] sm:$0xff]
    %v326 = vld [vmem:[#allocation5 + $0x18] sm:$0xff]
    %v327 = vld [vmem:[#allocation5 + $0x20] sm:$0xff]
    %v328 = vld [vmem:[#allocation5 + $0x28] sm:$0xff]
    %v329 = vld [vmem:[#allocation5 + $0x30] sm:$0xff]
    %v330 = vld [vmem:[#allocation5 + $0x38] sm:$0xff]
    %v331 = vld [vmem:[#allocation5 + $0x40] sm:$0xff]
    %v332 = vld [vmem:[#allocation5 + $0x48] sm:$0xff]
    %v333 = vld [vmem:[#allocation5 + $0x50] sm:$0xff]
    %v334 = vld [vmem:[#allocation5 + $0x58] sm:$0xff]
    %v335 = vld [vmem:[#allocation5 + $0x60] sm:$0xff]
    %v336 = vld [vmem:[#allocation5 + $0x68] sm:$0xff]
    %v337 = vld [vmem:[#allocation5 + $0x70] sm:$0xff]
    %v338 = vld [vmem:[#allocation5 + $0x78] sm:$0xff]
    %v339 = vld [vmem:[%s6] sm:$0x1]
    %v341 = vlaneseq
    %v342 = vshrl.u32 %v341, 7
    %v343 = vsub.s32 0, %v342
    %v344 = vrot.slane %v339, %v343
    %346 = vmatprep.subr.mxu0 0.0
    %347 = vmatpush1.msra.mxu0 %v338
    %348 = vmatprep.subr.mxu0 0.0
    %349 = vmatpush1.msra.mxu0 %v337
    %350 = vmatprep.subr.mxu0 0.0
    %351 = vmatpush1.msra.mxu0 %v336
    %352 = vmatprep.subr.mxu0 0.0
    %353 = vmatpush1.msra.mxu0 %v335
    %354 = vmatprep.subr.mxu0 0.0
    %355 = vmatpush1.msra.mxu0 %v334
    %356 = vmatprep.subr.mxu0 0.0
    %357 = vmatpush1.msra.mxu0 %v333
    %358 = vmatprep.subr.mxu0 0.0
    %359 = vmatpush1.msra.mxu0 %v332
    %360 = vmatprep.subr.mxu0 0.0
    %361 = vmatpush1.msra.mxu0 %v331
    %362 = vmatprep.subr.mxu0 0.0
    %363 = vmatpush1.msra.mxu0 %v330
    %364 = vmatprep.subr.mxu0 0.0
    %365 = vmatpush1.msra.mxu0 %v329
    %366 = vmatprep.subr.mxu0 0.0
    %367 = vmatpush1.msra.mxu0 %v328
    %368 = vmatprep.subr.mxu0 0.0
    %369 = vmatpush1.msra.mxu0 %v327
    %370 = vmatprep.subr.mxu0 0.0
    %371 = vmatpush1.msra.mxu0 %v326
    %372 = vmatprep.subr.mxu0 0.0
    %373 = vmatpush1.msra.mxu0 %v325
    %374 = vmatprep.subr.mxu0 0.0
    %375 = vmatpush1.msra.mxu0 %v324
    %376 = vmatprep.subr.mxu0 0.0
    %377 = vmatpush1.msra.mxu0 %v323
    %378 = vmatprep.subr.mxu0 0.0
    %379 = vmatpush2.msra.mxu0 0.0
    %380 = vmatprep.subr.mxu0 0.0
    %381 = vmatpush2.msra.mxu0 0.0
    %382 = vmatprep.subr.mxu0 0.0
    %383 = vmatpush2.msra.mxu0 0.0
    %384 = vmatprep.subr.mxu0 0.0
    %385 = vmatpush2.msra.mxu0 0.0
    %386 = vmatprep.subr.mxu0 0.0
    %387 = vmatpush2.msra.mxu0 0.0
    %388 = vmatprep.subr.mxu0 0.0
    %389 = vmatpush2.msra.mxu0 0.0
    %390 = vmatprep.subr.mxu0 0.0
    %391 = vmatpush2.msra.mxu0 0.0
    %392 = vmatprep.subr.mxu0 0.0
    %393 = vmatpush2.msra.mxu0 0.0
    %394 = vmatprep.subr.mxu0 0.0
    %395 = vmatpush2.msra.mxu0 0.0
    %396 = vmatprep.subr.mxu0 0.0
    %397 = vmatpush2.msra.mxu0 0.0
    %398 = vmatprep.subr.mxu0 0.0
    %399 = vmatpush2.msra.mxu0 0.0
    %400 = vmatprep.subr.mxu0 0.0
    %401 = vmatpush2.msra.mxu0 0.0
    %402 = vmatprep.subr.mxu0 0.0
    %403 = vmatpush2.msra.mxu0 0.0
    %404 = vmatprep.subr.mxu0 0.0
    %405 = vmatpush2.msra.mxu0 0.0
    %406 = vmatprep.subr.mxu0 0.0
    %407 = vmatpush2.msra.mxu0 0.0
    %408 = vmatprep.subr.mxu0 0.0
    %409 = vmatpush2.msra.mxu0 0.0
    %410 = vmatprep.mubr.f32.mxu0 0.0
    %411 = vmatmul.mubr.f32.gmra.mxu0 %v322
    %v412 = vpop.f32.mrf.mxu0
    %v413 = vadd.f32 %v344, %v412
    %v414 = vpop.f32.mrf.mxu0
    %415 = vdwg.mxu0
    %v416 = vlaneseq
    %v417 = vand.u32 %v416, 127
    %vm418 = vcmp.lt.s32.totalorder %v417, 10
    %v419 = vsel %vm418, %v413, -inf
    %420 = vmax.xlane.f32.xlu0 %v419
    %v421 = vpop.xlane.xlu0 %420
    %v422 = vsub.f32 %v419, %v421
    %v423 = vmul.f32 %v422, 1.442695
    %v424 = vpow.pop %v423
    %425 = vadd.xlane.f32.xlu0 %v424
    %v426 = vpop.xlane.xlu0 %425
    %v427 = vlog2.pop %v426
    %v428 = vmul.f32 %v427, 0.6931472
    %v429 = vadd.f32 %v421, %v428
    %v430 = vsub.f32 %v419, %v429
    %431 = vst [vmem:[#allocation7] sm:$0xff] %v430
    // Predicated region
    $region38: #{_forward_impl.1} parent=1 // pred_check
      _
    $region39: #{_forward_impl.1} parent=1 // pred_check_branch
      %433 = sbr.rel (0) target = $region41
    $region40: #{_forward_impl.1} parent=1 // pred_region
      %s435 = ssub.s32 128, 128
      %436 = vsyncadd [#allocation4], %s435
      %s438 = sshll.u32 [#allocation7], 4
      %s439 = int_to_ptr.vmem [resolvable:$true] %s438
      %441 = dma.vmem_to_hbm [thread:$0]  %s439, 128, %s7, [#allocation4]
    $region41: #{_forward_impl.1} parent=1 // pred_fallthru
      _
    // Predicated region
    $region42: #{_forward_impl.1} parent=1 // pred_check
      _
    $region43: #{_forward_impl.1} parent=1 // pred_check_branch
      %443 = sbr.rel (0) target = $region45
    $region44: #{_forward_impl.1} parent=1 // pred_region
      %444 = dma.done [#allocation4], 128
    $region45: #{_forward_impl.1} parent=1 // pred_fallthru
      _
    %445 = vsyncpa [#allocation3], 1
    %446 = vsyncpa [#allocation6], 1
    %447 = vsyncpa [#allocation4], 1

</llo_original>
